<compile_context>
chip_gen: v7x
topology: tpu7x:2x2x1
jax: 0.10.0
libtpu: 0.0.40
codegen_flags: <defaults>
</compile_context>

<pallas_src>
import math

import jax
import jax.numpy as jnp
from jax.experimental import pallas as pl
from jax.experimental.pallas import tpu as pltpu


_LANES = 128


def _round_up(x, m):
    return (x + m - 1) // m * m


def _make_rwing_kernel(omega, epsilon, radius):
    # C is a compile-time constant.
    c_const = omega - omega * math.log(1.0 + (omega - radius) / epsilon)

    def kernel(pred_ref, targ_ref, out_ref, sum_acc, cnt_acc):
        step = pl.program_id(0)

        @pl.when(step == 0)
        def _():
            sum_acc[...] = jnp.zeros_like(sum_acc)
            cnt_acc[...] = jnp.zeros_like(cnt_acc)

        # cast fused into the kernel (inputs may be bf16/f32/...)
        d = jnp.abs(targ_ref[...].astype(jnp.float32)
                    - pred_ref[...].astype(jnp.float32))

        in_wing = jnp.logical_and(d >= radius, d < omega)   # radius <= d < omega
        in_lin = d >= omega                                  # d >= omega

        # clamp keeps log argument > 0 even for the (masked-out) d < radius case
        wing_loss = omega * jnp.log(1.0 + jnp.maximum(d - radius, 0.0) / epsilon)
        lin_loss = d - c_const

        contrib = jnp.where(in_wing, wing_loss,
                            jnp.where(in_lin, lin_loss, 0.0))
        counted = jnp.logical_or(in_wing, in_lin).astype(jnp.float32)

        # per-lane partial sums (cross-sublane reduce only); lanes collapsed
        # once at the very end.
        sum_acc[...] += jnp.sum(contrib, axis=0, keepdims=True)
        cnt_acc[...] += jnp.sum(counted, axis=0, keepdims=True)

        @pl.when(step == pl.num_programs(0) - 1)
        def _():
            s = jnp.sum(sum_acc[...], axis=1, keepdims=True)   # (1, 1)
            c = jnp.sum(cnt_acc[...], axis=1, keepdims=True)   # (1, 1)
            out_ref[...] = jnp.where(c > 0.0, s / c, jnp.zeros_like(s))

    return kernel


def rectified_wing_loss(pred, target, omega=10.0, epsilon=2.0, radius=0.5,
                        max_tile_rows=512):
    assert pred.shape == target.shape
    total = math.prod(pred.shape)

    # Flatten to a lane-dense (rows, 128) layout; pad with pred==target==0
    # (delta = 0 < radius -> contributes nothing to sum or count).
    rows = max(_round_up(-(-total // _LANES), 8), 8)
    tile_rows = min(int(max_tile_rows), rows)
    rows = _round_up(rows, tile_rows)
    padded = rows * _LANES

    pred_f = jnp.ravel(pred)
    targ_f = jnp.ravel(target)
    if padded != total:
        pred_f = jnp.pad(pred_f, (0, padded - total))
        targ_f = jnp.pad(targ_f, (0, padded - total))
    pred2 = pred_f.reshape(rows, _LANES)
    targ2 = targ_f.reshape(rows, _LANES)

    kernel = _make_rwing_kernel(float(omega), float(epsilon), float(radius))

    out = pl.pallas_call(
        kernel,
        out_shape=jax.ShapeDtypeStruct((1, 1), jnp.float32),
        grid_spec=pltpu.PrefetchScalarGridSpec(
            num_scalar_prefetch=0,
            grid=(rows // tile_rows,),
            in_specs=[
                pl.BlockSpec((tile_rows, _LANES), lambda i: (i, 0)),
                pl.BlockSpec((tile_rows, _LANES), lambda i: (i, 0)),
            ],
            out_specs=pl.BlockSpec((1, 1), lambda i: (0, 0)),
            scratch_shapes=[
                pltpu.VMEM((1, _LANES), jnp.float32),   # running sum (per lane)
                pltpu.VMEM((1, _LANES), jnp.float32),   # running count (per lane)
            ],
        ),
        compiler_params=pltpu.CompilerParams(
            dimension_semantics=("arbitrary",)),   # accumulator axis
    )(pred2, targ2)
    return out[0, 0]


def _rwing_ref(pred, target, omega=10.0, epsilon=2.0, radius=0.5):
    # pure-JAX reference mirroring the PyTorch forward
    d = jnp.abs(target.astype(jnp.float32) - pred.astype(jnp.float32))
    c_const = omega - omega * math.log(1.0 + (omega - radius) / epsilon)
    m1 = jnp.logical_and(d >= radius, d < omega)
    m2 = d >= omega
    l1 = omega * jnp.log(1.0 + (d - radius) / epsilon)
    l2 = d - c_const
    s = jnp.sum(jnp.where(m1, l1, 0.0)) + jnp.sum(jnp.where(m2, l2, 0.0))
    n = jnp.sum(m1) + jnp.sum(m2)
    return jnp.where(n > 0, s / n, jnp.float32(0.0))


if __name__ == "__main__":
    key = jax.random.PRNGKey(0)
    k1, k2 = jax.random.split(key)

    B, L = 4, 196   # 4 samples, 98 landmarks * 2 coords
    pred = jax.random.normal(k1, (B, L), dtype=jnp.float32)
    target = pred + 3.0 * jax.random.normal(k2, (B, L), dtype=jnp.float32)

    # exercise every branch of the loss
    target = target.at[0, :8].set(pred[0, :8])            # delta == 0  (< radius)
    target = target.at[1, :8].set(pred[1, :8] + 15.0)     # delta >= omega
    target = target.at[2, :8].set(pred[2, :8] + 1.0)      # radius <= delta < omega

    loss = jax.block_until_ready(rectified_wing_loss(pred, target))
    loss_ref = _rwing_ref(pred, target)

    assert jnp.allclose(loss, loss_ref, rtol=1e-5, atol=1e-5), (loss, loss_ref)
    print("KERNEL_OK")
</pallas_src>

<mosaic_0001>
module attributes {stable_mosaic.version = 11 : i64} {
  func.func @kernel(%arg0: i32, %arg1: memref<8x128xf32, #tpu.memory_space<vmem>>, %arg2: memref<8x128xf32, #tpu.memory_space<vmem>>, %arg3: memref<1x1xf32, #tpu.memory_space<vmem>>, %arg4: memref<1x128xf32, #tpu.memory_space<vmem>>, %arg5: memref<1x128xf32, #tpu.memory_space<vmem>>) attributes {dimension_semantics = [#tpu.dimension_semantics<arbitrary>], iteration_bounds = array<i64: 1>, scalar_prefetch = 0 : i64, scratch_operands = 2 : i64, tpu.core_type = #tpu.core_type<tc>, window_params = [{transform_indices = @transform_0, window_bounds = array<i64: 8, 128>}, {transform_indices = @transform_1, window_bounds = array<i64: 8, 128>}, {pipeline_mode = #tpu.pipeline_mode<synchronous>, transform_indices = @transform_2, window_bounds = array<i64: 1, 1>}]} {
    %c0_i32 = arith.constant 0 : i32
    %0 = arith.cmpi eq, %arg0, %c0_i32 : i32
    %1 = arith.extui %0 : i1 to i32
    %c0_i32_0 = arith.constant 0 : i32
    %2 = arith.cmpi ne, %1, %c0_i32_0 : i32
    scf.if %2 {
      %cst_25 = arith.constant 0.000000e+00 : f32
      %46 = vector.broadcast %cst_25 : f32 to vector<1x128xf32>
      %c0_26 = arith.constant 0 : index
      %c0_27 = arith.constant 0 : index
      %47 = vector.load %arg4[%c0_26, %c0_27] : memref<1x128xf32, #tpu.memory_space<vmem>>, vector<1x128xf32>
      tpu.vector_store %arg4[%c0_26, %c0_27], %46 {strides = array<i32>} : memref<1x128xf32, #tpu.memory_space<vmem>>, vector<1x128xf32>,
      %cst_28 = arith.constant 0.000000e+00 : f32
      %48 = vector.broadcast %cst_28 : f32 to vector<1x128xf32>
      %c0_29 = arith.constant 0 : index
      %c0_30 = arith.constant 0 : index
      %49 = vector.load %arg5[%c0_29, %c0_30] : memref<1x128xf32, #tpu.memory_space<vmem>>, vector<1x128xf32>
      tpu.vector_store %arg5[%c0_29, %c0_30], %48 {strides = array<i32>} : memref<1x128xf32, #tpu.memory_space<vmem>>, vector<1x128xf32>,
    } else {
    }
    %c0 = arith.constant 0 : index
    %c0_1 = arith.constant 0 : index
    %3 = vector.load %arg2[%c0, %c0_1] : memref<8x128xf32, #tpu.memory_space<vmem>>, vector<8x128xf32>
    %c0_2 = arith.constant 0 : index
    %c0_3 = arith.constant 0 : index
    %4 = vector.load %arg1[%c0_2, %c0_3] : memref<8x128xf32, #tpu.memory_space<vmem>>, vector<8x128xf32>
    %5 = arith.subf %3, %4 : vector<8x128xf32>
    %6 = math.absf %5 : vector<8x128xf32>
    %cst = arith.constant 5.000000e-01 : f32
    %7 = vector.broadcast %cst : f32 to vector<8x128xf32>
    %8 = arith.cmpf oge, %6, %7 : vector<8x128xf32>
    %cst_4 = arith.constant 1.000000e+01 : f32
    %9 = vector.broadcast %cst_4 : f32 to vector<8x128xf32>
    %10 = arith.cmpf olt, %6, %9 : vector<8x128xf32>
    %11 = arith.andi %8, %10 : vector<8x128xi1>
    %cst_5 = arith.constant 1.000000e+01 : f32
    %12 = vector.broadcast %cst_5 : f32 to vector<8x128xf32>
    %13 = arith.cmpf oge, %6, %12 : vector<8x128xf32>
    %cst_6 = arith.constant 5.000000e-01 : f32
    %14 = vector.broadcast %cst_6 : f32 to vector<8x128xf32>
    %15 = arith.subf %6, %14 : vector<8x128xf32>
    %cst_7 = arith.constant 0.000000e+00 : f32
    %16 = vector.broadcast %cst_7 : f32 to vector<8x128xf32>
    %17 = arith.maximumf %15, %16 : vector<8x128xf32>
    %cst_8 = arith.constant 2.000000e+00 : f32
    %18 = vector.broadcast %cst_8 : f32 to vector<8x128xf32>
    %19 = arith.divf %17, %18 : vector<8x128xf32>
    %cst_9 = arith.constant 1.000000e+00 : f32
    %20 = vector.broadcast %cst_9 : f32 to vector<8x128xf32>
    %21 = arith.addf %20, %19 : vector<8x128xf32>
    %22 = math.log %21 : vector<8x128xf32>
    %cst_10 = arith.constant 1.000000e+01 : f32
    %23 = vector.broadcast %cst_10 : f32 to vector<8x128xf32>
    %24 = arith.mulf %23, %22 : vector<8x128xf32>
    %cst_11 = arith.constant -7.49199867 : f32
    %25 = vector.broadcast %cst_11 : f32 to vector<8x128xf32>
    %26 = arith.subf %6, %25 : vector<8x128xf32>
    %cst_12 = arith.constant 0.000000e+00 : f32
    %27 = vector.broadcast %cst_12 : f32 to vector<8x128xf32>
    %28 = arith.select %13, %26, %27 : vector<8x128xi1>, vector<8x128xf32>
    %29 = arith.select %11, %24, %28 : vector<8x128xi1>, vector<8x128xf32>
    %30 = arith.ori %11, %13 : vector<8x128xi1>
    %31 = arith.extui %30 : vector<8x128xi1> to vector<8x128xi32>
    %32 = arith.sitofp %31 : vector<8x128xi32> to vector<8x128xf32>
    %c0_13 = arith.constant 0 : index
    %c0_14 = arith.constant 0 : index
    %33 = vector.load %arg4[%c0_13, %c0_14] : memref<1x128xf32, #tpu.memory_space<vmem>>, vector<1x128xf32>
    %cst_15 = arith.constant dense<0.000000e+00> : vector<128xf32>
    %34 = vector.multi_reduction <add>, %29, %cst_15 [0] : vector<8x128xf32> to vector<128xf32>
    %35 = vector.shape_cast %34 : vector<128xf32> to vector<1x128xf32>
    %36 = arith.addf %33, %35 : vector<1x128xf32>
    %c0_16 = arith.constant 0 : index
    %c0_17 = arith.constant 0 : index
    %37 = vector.load %arg4[%c0_16, %c0_17] : memref<1x128xf32, #tpu.memory_space<vmem>>, vector<1x128xf32>
    tpu.vector_store %arg4[%c0_16, %c0_17], %36 {strides = array<i32>} : memref<1x128xf32, #tpu.memory_space<vmem>>, vector<1x128xf32>,
    %c0_18 = arith.constant 0 : index
    %c0_19 = arith.constant 0 : index
    %38 = vector.load %arg5[%c0_18, %c0_19] : memref<1x128xf32, #tpu.memory_space<vmem>>, vector<1x128xf32>
    %cst_20 = arith.constant dense<0.000000e+00> : vector<128xf32>
    %39 = vector.multi_reduction <add>, %32, %cst_20 [0] : vector<8x128xf32> to vector<128xf32>
    %40 = vector.shape_cast %39 : vector<128xf32> to vector<1x128xf32>
    %41 = arith.addf %38, %40 : vector<1x128xf32>
    %c0_21 = arith.constant 0 : index
    %c0_22 = arith.constant 0 : index
    %42 = vector.load %arg5[%c0_21, %c0_22] : memref<1x128xf32, #tpu.memory_space<vmem>>, vector<1x128xf32>
    tpu.vector_store %arg5[%c0_21, %c0_22], %41 {strides = array<i32>} : memref<1x128xf32, #tpu.memory_space<vmem>>, vector<1x128xf32>,
    %c0_i32_23 = arith.constant 0 : i32
    %43 = arith.cmpi eq, %arg0, %c0_i32_23 : i32
    %44 = arith.extui %43 : i1 to i32
    %c0_i32_24 = arith.constant 0 : i32
    %45 = arith.cmpi ne, %44, %c0_i32_24 : i32
    scf.if %45 {
      %c0_25 = arith.constant 0 : index
      %c0_26 = arith.constant 0 : index
      %46 = vector.load %arg4[%c0_25, %c0_26] : memref<1x128xf32, #tpu.memory_space<vmem>>, vector<1x128xf32>
      %cst_27 = arith.constant dense<0.000000e+00> : vector<1xf32>
      %47 = vector.multi_reduction <add>, %46, %cst_27 [1] : vector<1x128xf32> to vector<1xf32>
      %48 = vector.shape_cast %47 : vector<1xf32> to vector<1x1xf32>
      %c0_28 = arith.constant 0 : index
      %c0_29 = arith.constant 0 : index
      %49 = vector.load %arg5[%c0_28, %c0_29] : memref<1x128xf32, #tpu.memory_space<vmem>>, vector<1x128xf32>
      %cst_30 = arith.constant dense<0.000000e+00> : vector<1xf32>
      %50 = vector.multi_reduction <add>, %49, %cst_30 [1] : vector<1x128xf32> to vector<1xf32>
      %51 = vector.shape_cast %50 : vector<1xf32> to vector<1x1xf32>
      %cst_31 = arith.constant 0.000000e+00 : f32
      %52 = vector.broadcast %cst_31 : f32 to vector<1x1xf32>
      %53 = arith.cmpf ogt, %51, %52 : vector<1x1xf32>
      %54 = arith.divf %48, %51 : vector<1x1xf32>
      %cst_32 = arith.constant 0.000000e+00 : f32
      %55 = vector.broadcast %cst_32 : f32 to vector<1x1xf32>
      %56 = arith.select %53, %54, %55 : vector<1x1xi1>, vector<1x1xf32>
      %c0_33 = arith.constant 0 : index
      %c0_34 = arith.constant 0 : index
      %57 = vector.load %arg3[%c0_33, %c0_34] : memref<1x1xf32, #tpu.memory_space<vmem>>, vector<1x1xf32>
      tpu.vector_store %arg3[%c0_33, %c0_34], %56 {strides = array<i32>} : memref<1x1xf32, #tpu.memory_space<vmem>>, vector<1x1xf32>,
    } else {
    }
    return
  }
  func.func @transform_0(%arg0: i32) -> (i32, i32) {
    %c0_i32 = arith.constant 0 : i32
    %c0_i32_0 = arith.constant 0 : i32
    return %arg0, %c0_i32 : i32, i32
  }
  func.func @transform_1(%arg0: i32) -> (i32, i32) {
    %c0_i32 = arith.constant 0 : i32
    %c0_i32_0 = arith.constant 0 : i32
    return %arg0, %c0_i32 : i32, i32
  }
  func.func @transform_2(%arg0: i32) -> (i32, i32) {
    %c0_i32 = arith.constant 0 : i32
    %c0_i32_0 = arith.constant 0 : i32
    %c0_i32_1 = arith.constant 0 : i32
    return %c0_i32, %c0_i32_0 : i32, i32
  }
}

</mosaic_0001>

<llo_original>
// kernel: tpu_custom_call.1
$region0: #{tpu_custom_call.1}
  #allocation0 [shape = 'u32[]', space=smem, size = 0x4, offset = 0x4, fixed_abs, tag = 'smem constant byte address 0x4 - core index']
  #allocation1 [shape = 'u32[144,128]{1,0:T(1,128)}', space=vmem, size = 0x12000, scoped, tag = 'internal scratch']
  #allocation2 [shape = 'f32[1,128]{1,0:T(1,128)}', space=vmem, size = 0x200, scoped, tag = 'scratch operand']
  #allocation3 [shape = 'f32[1,128]{1,0:T(1,128)}', space=vmem, size = 0x200, scoped, tag = 'scratch operand']
  %s0 = inlined_call_operand.hbm [shape: f32[8,128], index: 0, kind: input, shape index: {}]
  %s1 = inlined_call_operand.hbm [shape: f32[8,128], index: 1, kind: input, shape index: {}]
  %s2 = inlined_call_operand.hbm [shape: f32[1,1], index: 2, kind: output, shape index: {}]
  %s3 = sld [smem:[#allocation0]]
  $region34: #{tpu_custom_call.1} parent=0
    _
  %s5 = ssub.s32 1, %s3
  %s6 = scalar_select 0, %s5, %s3
  $region1: #{tpu_custom_call.1} parent=0
    #allocation4 [shape = 'u8[4096]{0}', space=vmem, size = 0x1000, scoped, tag = 'input window, operand 0, single buffered']
    #allocation5 [shape = 's32[1]{0}', space=sflag, size = 0x4, scoped, tag = 'scoped memory for tpu_custom_call.1']
    #allocation6 [shape = 's32[1]{0}', space=sflag, size = 0x4, scoped, tag = 'scoped memory for tpu_custom_call.1']
    #allocation7 [shape = 'u8[4096]{0}', space=vmem, size = 0x1000, scoped, tag = 'input window, operand 1, single buffered']
    #allocation8 [shape = 's32[1]{0}', space=sflag, size = 0x4, scoped, tag = 'scoped memory for tpu_custom_call.1']
    #allocation9 [shape = 'u8[512]{0}', space=vmem, size = 0x400, scoped, tag = 'output window, operand 0, single buffered']
    %7 = vsyncpa [#allocation5], 0
    %8 = vsyncpa [#allocation8], 0
    %9 = vsyncpa [#allocation6], 0
    // Predicated region
    $region2: #{tpu_custom_call.1} parent=1 // pred_check
      _
    $region3: #{tpu_custom_call.1} parent=1 // pred_check_branch
      %11 = sbr.rel (0) target = $region5
    $region4: #{tpu_custom_call.1} parent=1 // pred_region
      %s13 = ssub.s32 128, 128
      %14 = vsyncadd [#allocation5], %s13
      %s16 = sshll.u32 [#allocation4], 4
      %s17 = int_to_ptr.vmem [resolvable:$true] %s16
      %19 = dma.hbm_to_vmem [thread:$0]  %s0, 128, %s17, [#allocation5]
    $region5: #{tpu_custom_call.1} parent=1 // pred_fallthru
      _
    // Predicated region
    $region6: #{tpu_custom_call.1} parent=1 // pred_check
      _
    $region7: #{tpu_custom_call.1} parent=1 // pred_check_branch
      %21 = sbr.rel (0) target = $region9
    $region8: #{tpu_custom_call.1} parent=1 // pred_region
      %s23 = ssub.s32 128, 128
      %24 = vsyncadd [#allocation8], %s23
      %s26 = sshll.u32 [#allocation7], 4
      %s27 = int_to_ptr.vmem [resolvable:$true] %s26
      %29 = dma.hbm_to_vmem [thread:$0]  %s1, 128, %s27, [#allocation8]
    $region9: #{tpu_custom_call.1} parent=1 // pred_fallthru
      _
    // Predicated region
    $region10: #{tpu_custom_call.1} parent=1 // pred_check
      _
    $region11: #{tpu_custom_call.1} parent=1 // pred_check_branch
      %31 = sbr.rel (0) target = $region13
    $region12: #{tpu_custom_call.1} parent=1 // pred_region
      %32 = dma.done [#allocation5], 128
    $region13: #{tpu_custom_call.1} parent=1 // pred_fallthru
      _
    // Predicated region
    $region14: #{tpu_custom_call.1} parent=1 // pred_check
      _
    $region15: #{tpu_custom_call.1} parent=1 // pred_check_branch
      %34 = sbr.rel (0) target = $region17
    $region16: #{tpu_custom_call.1} parent=1 // pred_region
      %35 = dma.done [#allocation8], 128
    $region17: #{tpu_custom_call.1} parent=1 // pred_fallthru
      _
    %p36 = scmp.eq.s32.totalorder 0, 0
    // Predicated region
    $region18: #{tpu_custom_call.1} parent=1 // pred_check
      %p37 = pneg %p36
    $region19: #{tpu_custom_call.1} parent=1 // pred_check_branch
      %39 = sbr.rel (%p37) target = $region21
    $region20: #{tpu_custom_call.1} parent=1 // pred_region
      %40 = vst [vmem:[#allocation2] sm:$0x1] 0.0
      %41 = vst [vmem:[#allocation3] sm:$0x1] 0.0
    $region21: #{tpu_custom_call.1} parent=1 // pred_fallthru
      _
    %v42 = vld [vmem:[#allocation7] sm:$0xff]
    %v43 = vld [vmem:[#allocation4] sm:$0xff]
    %v44 = vsub.f32 %v42, %v43
    %v45 = vand.u32 2147483647, %v44
    %vm46 = vcmp.ge.f32.partialorder %v45, 0.5
    %vm47 = vcmp.lt.f32.partialorder %v45, 10.0
    %vm48 = vmand %vm46, %vm47
    %vm49 = vcmp.ge.f32.partialorder %v45, 10.0
    %v50 = vsub.f32 %v45, 0.5
    %v51 = vmax.f32 %v50, 0.0
    %v52 = vrcp.pop 2.0
    %v53 = vmul.f32 %v51, %v52
    %v54 = vadd.f32 %v53, 1.0
    %v55 = vlog2.pop %v54
    %v56 = vmul.f32 %v55, 0.6931472
    %v57 = vmul.f32 %v56, 10.0
    %v58 = vsub.f32 %v45, -7.4919987
    %v59 = vsel %vm49, %v58, 0.0
    %v60 = vsel %vm48, %v57, %v59
    %vm61 = vmor %vm48, %vm49
    %v62 = vsel %vm61, 1, 0
    %v63 = vcvt.s32.f32 %v62
    %v64 = vld [vmem:[#allocation2] sm:$0x1]
    %v65 = vrot.slane %v60, 4
    %v66 = vadd.f32 %v60, %v65
    %v67 = vrot.slane %v66, 2
    %v68 = vadd.f32 %v66, %v67
    %v69 = vrot.slane %v68, 1
    %v70 = vadd.f32 %v68, %v69
    %v71 = vadd.f32 %v64, %v70
    %72 = vst [vmem:[#allocation2] sm:$0x1] %v71
    %v73 = vld [vmem:[#allocation3] sm:$0x1]
    %v74 = vrot.slane %v63, 4
    %v75 = vadd.f32 %v63, %v74
    %v76 = vrot.slane %v75, 2
    %v77 = vadd.f32 %v75, %v76
    %v78 = vrot.slane %v77, 1
    %v79 = vadd.f32 %v77, %v78
    %v80 = vadd.f32 %v73, %v79
    %81 = vst [vmem:[#allocation3] sm:$0x1] %v80
    // Predicated region
    $region22: #{tpu_custom_call.1} parent=1 // pred_check
      %p82 = pneg %p36
    $region23: #{tpu_custom_call.1} parent=1 // pred_check_branch
      %84 = sbr.rel (%p82) target = $region25
    $region24: #{tpu_custom_call.1} parent=1 // pred_region
      %v85 = vld [vmem:[#allocation2] sm:$0x1]
      %vm86 = vcmask 1040384
      %v87 = vsel %vm86, %v85, 0.0
      %88 = vadd.xlane.f32.xlu0 %v87
      %v89 = vpop.xlane.xlu0 %88
      %v90 = vld [vmem:[#allocation3] sm:$0x1]
      %v91 = vsel %vm86, %v90, 0.0
      %92 = vadd.xlane.f32.xlu0 %v91
      %v93 = vpop.xlane.xlu0 %92
      %vm94 = vcmp.gt.f32.partialorder %v93, 0.0
      %v95 = vrcp.pop %v93
      %v96 = vmul.f32 %v89, %v95
      %v97 = vsel %vm94, %v96, 0.0
      %vm98 = vcmask 0
      %99 = vst.msk [vmem:[#allocation9] sm:$0x1] %vm98, %v97
    $region25: #{tpu_custom_call.1} parent=1 // pred_fallthru
      _
    // Predicated region
    $region26: #{tpu_custom_call.1} parent=1 // pred_check
      _
    $region27: #{tpu_custom_call.1} parent=1 // pred_check_branch
      %101 = sbr.rel (0) target = $region29
    $region28: #{tpu_custom_call.1} parent=1 // pred_region
      %s103 = ssub.s32 16, 16
      %104 = vsyncadd [#allocation6], %s103
      %s106 = sshll.u32 [#allocation9], 4
      %s107 = int_to_ptr.vmem [resolvable:$true] %s106
      %109 = dma.vmem_to_hbm [thread:$0]  %s107, 16, %s2, [#allocation6]
    $region29: #{tpu_custom_call.1} parent=1 // pred_fallthru
      _
    // Predicated region
    $region30: #{tpu_custom_call.1} parent=1 // pred_check
      _
    $region31: #{tpu_custom_call.1} parent=1 // pred_check_branch
      %111 = sbr.rel (0) target = $region33
    $region32: #{tpu_custom_call.1} parent=1 // pred_region
      %112 = dma.done [#allocation6], 16
    $region33: #{tpu_custom_call.1} parent=1 // pred_fallthru
      _
    %113 = vsyncpa [#allocation5], 1
    %114 = vsyncpa [#allocation8], 1
    %115 = vsyncpa [#allocation6], 1

</llo_original>
